<compile_context>
chip_gen: v5e
topology: v5e:2x2
jax: 0.10.0
libtpu: 0.0.40
codegen_flags: <defaults>
</compile_context>

<pallas_src>
import functools

import jax
import jax.numpy as jnp
from jax import lax
from jax.experimental import pallas as pl
from jax.experimental.pallas import tpu as pltpu

block_size = 8
n_embd = 32
vocab_size = 65  # synthetic char vocabulary

_LANE = 128          # lane width / padded vocab
_NEG = -1e9          # baked into padded vocab columns (finite to avoid 0*inf NaN)
_ROW_BLOCK = 256     # token rows per grid step (amortizes per-step overhead)


def _round_up(x, m):
    return ((x + m - 1) // m) * m


# ----------------------------------------------------------------------------
# Kernel 1 (one-shot): fused_table = emb_padded @ W_padded + b_padded
#   emb_p : (VP, E), w_p : (E, VP), b_p : (1, VP)  ->  (VP, VP)
# Padded vocab columns of b_p hold -1e9, so fused_table's padded columns are
# -1e9 for every row (W padded columns are zero).
# ----------------------------------------------------------------------------
def _fuse_table_kernel(emb_ref, w_ref, b_ref, out_ref):
    out_ref[...] = (
        jnp.dot(emb_ref[...], w_ref[...], preferred_element_type=jnp.float32)
        + b_ref[0, :][None, :])


def _fuse_table(emb_p, w_p, b_p):
    VP, E = emb_p.shape
    return pl.pallas_call(
        _fuse_table_kernel,
        out_shape=jax.ShapeDtypeStruct((VP, VP), jnp.float32),
        grid_spec=pltpu.PrefetchScalarGridSpec(
            num_scalar_prefetch=0,
            grid=(1,),
            in_specs=[
                pl.BlockSpec((VP, E), lambda i: (0, 0)),
                pl.BlockSpec((E, VP), lambda i: (0, 0)),
                pl.BlockSpec((1, VP), lambda i: (0, 0)),
            ],
            out_specs=pl.BlockSpec((VP, VP), lambda i: (0, 0)),
        ),
    )(emb_p, w_p, b_p)


# ----------------------------------------------------------------------------
# Kernel 2: per row-block of tokens
#   logits_block = one_hot(idx_block) @ fused_table        (MXU row gather)
#   loss_partial = sum over valid rows of (lse - target_logit)
# Padded vocab columns of the fused table are -1e9 -> exp underflows to 0 and
# they never win the row max, so no extra masking is needed for the CE.
# ----------------------------------------------------------------------------
def _bigram_block_kernel(n_real, idx_ref, tgt_ref, table_ref,
                         logits_ref, loss_ref):
    blk, vp = logits_ref.shape
    pid = pl.program_id(0)

    idx = idx_ref[0, :]                                           # (blk,) int32
    col = lax.broadcasted_iota(jnp.int32, (blk, vp), 1)           # (blk, VP)
    one_hot = (idx[:, None] == col).astype(jnp.float32)           # (blk, VP)

    logits = jnp.dot(one_hot, table_ref[...],
                     preferred_element_type=jnp.float32)          # (blk, VP)
    logits_ref[...] = logits

    # fused cross-entropy partial sum for this block
    tgt = tgt_ref[0, :]                                           # (blk,) int32
    row_max = jnp.max(logits, axis=-1, keepdims=True)             # (blk, 1)
    lse = row_max + jnp.log(
        jnp.sum(jnp.exp(logits - row_max), axis=-1, keepdims=True))   # (blk, 1)
    tgt_oh = (tgt[:, None] == col).astype(jnp.float32)            # (blk, VP)
    tgt_logit = jnp.sum(tgt_oh * logits, axis=-1, keepdims=True)  # (blk, 1)

    row_ids = pid * blk + lax.broadcasted_iota(jnp.int32, (blk, 1), 0)
    valid = (row_ids < n_real).astype(jnp.float32)                # mask padded rows
    partial = jnp.sum((lse - tgt_logit) * valid)                  # scalar
    loss_ref[...] = jnp.zeros((1, vp), jnp.float32) + partial     # broadcast store


def bigram_forward(idx, emb_table, w, b, targets=None):
    B, T = idx.shape
    V, E = emb_table.shape
    VP = _round_up(V, _LANE)

    # Pad weights to lane width; padded vocab columns get -1e9 via the bias.
    emb_p = jnp.zeros((VP, E), jnp.float32).at[:V, :].set(emb_table.astype(jnp.float32))
    w_p = jnp.zeros((E, VP), jnp.float32).at[:, :V].set(w.astype(jnp.float32))
    b_p = jnp.full((1, VP), _NEG, jnp.float32).at[0, :V].set(b.astype(jnp.float32))

    fused = _fuse_table(emb_p, w_p, b_p)                          # (VP, VP)

    # Flatten (B, T) -> row blocks of up to _ROW_BLOCK tokens.
    N = B * T
    NP = _round_up(N, 8)
    blk = min(_ROW_BLOCK, NP)
    NP = _round_up(NP, blk)
    num_blocks = NP // blk

    idx_flat = jnp.zeros((NP,), jnp.int32).at[:N].set(idx.reshape(N).astype(jnp.int32))
    if targets is None:
        tgt_flat = jnp.zeros((NP,), jnp.int32)
    else:
        tgt_flat = jnp.zeros((NP,), jnp.int32).at[:N].set(
            targets.reshape(N).astype(jnp.int32))
    idx2d = idx_flat.reshape(num_blocks, blk)
    tgt2d = tgt_flat.reshape(num_blocks, blk)

    logits_pad, loss_parts = pl.pallas_call(
        functools.partial(_bigram_block_kernel, N),
        out_shape=(jax.ShapeDtypeStruct((NP, VP), jnp.float32),
                   jax.ShapeDtypeStruct((num_blocks, VP), jnp.float32)),
        grid_spec=pltpu.PrefetchScalarGridSpec(
            num_scalar_prefetch=0,
            grid=(num_blocks,),
            in_specs=[
                pl.BlockSpec((1, blk), lambda i: (i, 0)),     # token ids block
                pl.BlockSpec((1, blk), lambda i: (i, 0)),     # targets block
                pl.BlockSpec((VP, VP), lambda i: (0, 0)),     # fused table (resident)
            ],
            out_specs=[
                pl.BlockSpec((blk, VP), lambda i: (i, 0)),    # lane-dense logits
                pl.BlockSpec((1, VP), lambda i: (i, 0)),      # per-block loss partial
            ],
        ),
        compiler_params=pltpu.CompilerParams(
            dimension_semantics=("parallel",)),
    )(idx2d, tgt2d, fused)

    logits_flat = logits_pad[:N, :V]                              # strip padding
    if targets is None:
        return logits_flat.reshape(B, T, V), None
    loss = jnp.sum(loss_parts[:, 0]) / N
    return logits_flat, loss


# ----------------------------------------------------------------------------
# Module wrapper
# ----------------------------------------------------------------------------
class BigramLanguageModelPallas:
    def __init__(self, key):
        k_tok, k_pos, k_w, k_b = jax.random.split(key, 4)
        # nn.Embedding init ~ N(0,1)
        self.token_embedding_table = jax.random.normal(
            k_tok, (vocab_size, n_embd), dtype=jnp.float32)
        # Initialized for parity with the PyTorch module; unused in forward.
        self.position_embedding_table = jax.random.normal(
            k_pos, (block_size, n_embd), dtype=jnp.float32)
        # nn.Linear(n_embd, vocab_size)
        bound = 1.0 / (n_embd ** 0.5)
        self.lm_head_w = jax.random.uniform(
            k_w, (n_embd, vocab_size), minval=-bound, maxval=bound,
            dtype=jnp.float32)
        self.lm_head_b = jax.random.uniform(
            k_b, (vocab_size,), minval=-bound, maxval=bound, dtype=jnp.float32)

    def forward(self, idx, targets=None):
        return bigram_forward(idx, self.token_embedding_table,
                              self.lm_head_w, self.lm_head_b, targets)

    # TODO(synk): generate() is a host-side autoregressive torch.multinomial
    # sampling loop; not a kernel hot path, omitted.


def _reference_forward(model, idx, targets=None):
    tok_emb = model.token_embedding_table[idx]                    # (B, T, E)
    logits = jnp.einsum("bte,ev->btv", tok_emb, model.lm_head_w,
                        precision=lax.Precision.HIGHEST) + model.lm_head_b
    if targets is None:
        return logits, None
    lf = logits.reshape(-1, vocab_size)
    tf = targets.reshape(-1)
    lse = jax.scipy.special.logsumexp(lf, axis=-1)
    tgt = lf[jnp.arange(lf.shape[0]), tf]
    return lf, jnp.mean(lse - tgt)


if __name__ == "__main__":
    key = jax.random.PRNGKey(0)
    k_model, k_idx, k_tgt = jax.random.split(key, 3)

    model = BigramLanguageModelPallas(k_model)

    B, T = 2, block_size
    idx = jax.random.randint(k_idx, (B, T), 0, vocab_size, dtype=jnp.int32)
    targets = jax.random.randint(k_tgt, (B, T), 0, vocab_size, dtype=jnp.int32)

    # targets=None path
    logits, loss = model.forward(idx, targets=None)
    logits = jax.block_until_ready(logits)
    assert loss is None
    ref_logits, _ = _reference_forward(model, idx, None)
    assert logits.shape == (B, T, vocab_size)
    assert jnp.allclose(logits, ref_logits, atol=1e-3, rtol=1e-3)

    # targets path (fused cross-entropy)
    logits_flat, loss = model.forward(idx, targets=targets)
    loss = jax.block_until_ready(loss)
    ref_lf, ref_loss = _reference_forward(model, idx, targets)
    assert logits_flat.shape == (B * T, vocab_size)
    assert jnp.allclose(logits_flat, ref_lf, atol=1e-3, rtol=1e-3)
    assert jnp.allclose(loss, ref_loss, atol=1e-3, rtol=1e-3)

    print("KERNEL_OK")
</pallas_src>

<mosaic_0001>
module attributes {stable_mosaic.version = 11 : i64} {
  func.func @_fuse_table_kernel(%arg0: i32, %arg1: memref<128x32xf32, #tpu.memory_space<vmem>>, %arg2: memref<32x128xf32, #tpu.memory_space<vmem>>, %arg3: memref<1x128xf32, #tpu.memory_space<vmem>>, %arg4: memref<128x128xf32, #tpu.memory_space<vmem>>) attributes {dimension_semantics = [#tpu.dimension_semantics<arbitrary>], iteration_bounds = array<i64: 1>, scalar_prefetch = 0 : i64, scratch_operands = 0 : i64, tpu.core_type = #tpu.core_type<tc>, window_params = [{pipeline_mode = #tpu.pipeline_mode<synchronous>, transform_indices = @transform_0, window_bounds = array<i64: 128, 32>}, {pipeline_mode = #tpu.pipeline_mode<synchronous>, transform_indices = @transform_1, window_bounds = array<i64: 32, 128>}, {pipeline_mode = #tpu.pipeline_mode<synchronous>, transform_indices = @transform_2, window_bounds = array<i64: 1, 128>}, {pipeline_mode = #tpu.pipeline_mode<synchronous>, transform_indices = @transform_3, window_bounds = array<i64: 128, 128>}]} {
    %c0 = arith.constant 0 : index
    %c0_0 = arith.constant 0 : index
    %0 = vector.load %arg1[%c0, %c0_0] : memref<128x32xf32, #tpu.memory_space<vmem>>, vector<128x32xf32>
    %c0_1 = arith.constant 0 : index
    %c0_2 = arith.constant 0 : index
    %1 = vector.load %arg2[%c0_1, %c0_2] : memref<32x128xf32, #tpu.memory_space<vmem>>, vector<32x128xf32>
    %cst = arith.constant dense<0.000000e+00> : vector<128x128xf32>
    %2 = tpu.matmul %0, %1, %cst {dimension_numbers = #tpu.dot_dimension_numbers<[1], [0], [0], [1], [0, 0, 1, 1], [], []>} : vector<128x32xf32>, vector<32x128xf32>, vector<128x128xf32> -> vector<128x128xf32>
    %c0_3 = arith.constant 0 : index
    %c0_4 = arith.constant 0 : index
    %3 = vector.load %arg3[%c0_3, %c0_4] : memref<1x128xf32, #tpu.memory_space<vmem>>, vector<1x128xf32>
    %4 = vector.shape_cast %3 : vector<1x128xf32> to vector<128xf32>
    %5 = vector.shape_cast %4 : vector<128xf32> to vector<1x128xf32>
    %6 = vector.broadcast %5 : vector<1x128xf32> to vector<128x128xf32>
    %7 = arith.addf %2, %6 : vector<128x128xf32>
    %c0_5 = arith.constant 0 : index
    %c0_6 = arith.constant 0 : index
    %8 = vector.load %arg4[%c0_5, %c0_6] : memref<128x128xf32, #tpu.memory_space<vmem>>, vector<128x128xf32>
    tpu.vector_store %arg4[%c0_5, %c0_6], %7 {strides = array<i32>} : memref<128x128xf32, #tpu.memory_space<vmem>>, vector<128x128xf32>,
    return
  }
  func.func @transform_0(%arg0: i32) -> (i32, i32) {
    %c0_i32 = arith.constant 0 : i32
    %c0_i32_0 = arith.constant 0 : i32
    %c0_i32_1 = arith.constant 0 : i32
    return %c0_i32, %c0_i32_0 : i32, i32
  }
  func.func @transform_1(%arg0: i32) -> (i32, i32) {
    %c0_i32 = arith.constant 0 : i32
    %c0_i32_0 = arith.constant 0 : i32
    %c0_i32_1 = arith.constant 0 : i32
    return %c0_i32, %c0_i32_0 : i32, i32
  }
  func.func @transform_2(%arg0: i32) -> (i32, i32) {
    %c0_i32 = arith.constant 0 : i32
    %c0_i32_0 = arith.constant 0 : i32
    %c0_i32_1 = arith.constant 0 : i32
    return %c0_i32, %c0_i32_0 : i32, i32
  }
  func.func @transform_3(%arg0: i32) -> (i32, i32) {
    %c0_i32 = arith.constant 0 : i32
    %c0_i32_0 = arith.constant 0 : i32
    %c0_i32_1 = arith.constant 0 : i32
    return %c0_i32, %c0_i32_0 : i32, i32
  }
}

</mosaic_0001>

<llo_original>
// kernel: tpu_custom_call.1
$region0: #{tpu_custom_call.1}
  #allocation0 [shape = 'u32[]', space=smem, size = 0x4, offset = 0x4, fixed_abs, tag = 'smem constant byte address 0x4 - core index']
  #allocation1 [shape = 'u32[72,128]{1,0:T(1,128)}', space=vmem, size = 0x9000, scoped, tag = 'internal scratch']
  %s0 = inlined_call_operand.vmem [shape: f32[128,32], index: 0, kind: input, shape index: {}]
  %s1 = inlined_call_operand.vmem [shape: f32[32,128], index: 1, kind: input, shape index: {}]
  %s2 = inlined_call_operand.vmem [shape: f32[1,128], index: 2, kind: input, shape index: {}]
  %s3 = inlined_call_operand.hbm [shape: f32[128,128], index: 3, kind: output, shape index: {}]
  %s4 = sld [smem:[#allocation0]]
  $region22: #{tpu_custom_call.1} parent=0
    _
  %s6 = ssub.s32 1, %s4
  %s7 = scalar_select 0, %s6, %s4
  $region1: #{tpu_custom_call.1} parent=0
    #allocation2 [shape = 'u8[65536]{0}', space=vmem, size = 0x10000, scoped, tag = 'output window, operand 0, single buffered']
    #allocation3 [shape = 's32[1]{0}', space=sflag, size = 0x4, scoped, tag = 'scoped memory for tpu_custom_call.1']
    %8 = vsyncpa [#allocation3], 0
    // Predicated region
    $region2: #{tpu_custom_call.1} parent=1 // pred_check
      _
    $region3: #{tpu_custom_call.1} parent=1 // pred_check_branch
      %10 = sbr.rel (0) target = $region5
    $region4: #{tpu_custom_call.1} parent=1 // pred_region
      _
    $region5: #{tpu_custom_call.1} parent=1 // pred_fallthru
      _
    // Predicated region
    $region6: #{tpu_custom_call.1} parent=1 // pred_check
      _
    $region7: #{tpu_custom_call.1} parent=1 // pred_check_branch
      %12 = sbr.rel (0) target = $region9
    $region8: #{tpu_custom_call.1} parent=1 // pred_region
      _
    $region9: #{tpu_custom_call.1} parent=1 // pred_fallthru
      _
    // Predicated region
    $region10: #{tpu_custom_call.1} parent=1 // pred_check
      _
    $region11: #{tpu_custom_call.1} parent=1 // pred_check_branch
      %14 = sbr.rel (0) target = $region13
    $region12: #{tpu_custom_call.1} parent=1 // pred_region
      _
    $region13: #{tpu_custom_call.1} parent=1 // pred_fallthru
      _
    %v15 = vld [vmem:[%s0] sm:$0xff]
    %v16 = vld [vmem:[%s0 + $0x8] sm:$0xff]
    %v17 = vld [vmem:[%s0 + $0x10] sm:$0xff]
    %v18 = vld [vmem:[%s0 + $0x18] sm:$0xff]
    %v19 = vld [vmem:[%s0 + $0x20] sm:$0xff]
    %v20 = vld [vmem:[%s0 + $0x28] sm:$0xff]
    %v21 = vld [vmem:[%s0 + $0x30] sm:$0xff]
    %v22 = vld [vmem:[%s0 + $0x38] sm:$0xff]
    %v23 = vld [vmem:[%s0 + $0x40] sm:$0xff]
    %v24 = vld [vmem:[%s0 + $0x48] sm:$0xff]
    %v25 = vld [vmem:[%s0 + $0x50] sm:$0xff]
    %v26 = vld [vmem:[%s0 + $0x58] sm:$0xff]
    %v27 = vld [vmem:[%s0 + $0x60] sm:$0xff]
    %v28 = vld [vmem:[%s0 + $0x68] sm:$0xff]
    %v29 = vld [vmem:[%s0 + $0x70] sm:$0xff]
    %v30 = vld [vmem:[%s0 + $0x78] sm:$0xff]
    %v31 = vld [vmem:[%s1] sm:$0xff]
    %v32 = vld [vmem:[%s1 + $0x8] sm:$0xff]
    %v33 = vld [vmem:[%s1 + $0x10] sm:$0xff]
    %v34 = vld [vmem:[%s1 + $0x18] sm:$0xff]
    %v35 = vld [vmem:[%s2] sm:$0x1]
    %v37 = vperm.slane %v35, 0
    %vm39 = vcmask 261120
    %v41 = vsel %vm39, %v15, 0
    %v44 = vsel %vm39, %v16, 0
    %v47 = vsel %vm39, %v17, 0
    %v50 = vsel %vm39, %v18, 0
    %v53 = vsel %vm39, %v19, 0
    %v56 = vsel %vm39, %v20, 0
    %v59 = vsel %vm39, %v21, 0
    %v62 = vsel %vm39, %v22, 0
    %v65 = vsel %vm39, %v23, 0
    %v68 = vsel %vm39, %v24, 0
    %v71 = vsel %vm39, %v25, 0
    %v74 = vsel %vm39, %v26, 0
    %v77 = vsel %vm39, %v27, 0
    %v80 = vsel %vm39, %v28, 0
    %v83 = vsel %vm39, %v29, 0
    %v86 = vsel %vm39, %v30, 0
    %88 = vmatpush.msra.mxu0 0.0
    %89 = vmatpush.msra.mxu0 0.0
    %90 = vmatpush.msra.mxu0 0.0
    %91 = vmatpush.msra.mxu0 0.0
    %92 = vmatpush.msra.mxu0 0.0
    %93 = vmatpush.msra.mxu0 0.0
    %94 = vmatpush.msra.mxu0 0.0
    %95 = vmatpush.msra.mxu0 0.0
    %96 = vmatpush.msra.mxu0 0.0
    %97 = vmatpush.msra.mxu0 0.0
    %98 = vmatpush.msra.mxu0 0.0
    %99 = vmatpush.msra.mxu0 0.0
    %100 = vmatpush.msra.mxu0 %v34
    %101 = vmatpush.msra.mxu0 %v33
    %102 = vmatpush.msra.mxu0 %v32
    %103 = vmatpush.msra.mxu0 %v31
    %104 = vmatmul.f32.gmra.mxu0 %v41
    %v105 = vpop.f32.mrf.mxu0
    %v106 = vadd.f32 %v37, %v105
    %107 = vmatmul.f32.gmra.mxu0 %v44
    %v108 = vpop.f32.mrf.mxu0
    %v109 = vadd.f32 %v37, %v108
    %110 = vmatmul.f32.gmra.mxu0 %v47
    %v111 = vpop.f32.mrf.mxu0
    %v112 = vadd.f32 %v37, %v111
    %113 = vmatmul.f32.gmra.mxu0 %v50
    %v114 = vpop.f32.mrf.mxu0
    %v115 = vadd.f32 %v37, %v114
    %116 = vmatmul.f32.gmra.mxu0 %v53
    %v117 = vpop.f32.mrf.mxu0
    %v118 = vadd.f32 %v37, %v117
    %119 = vmatmul.f32.gmra.mxu0 %v56
    %v120 = vpop.f32.mrf.mxu0
    %v121 = vadd.f32 %v37, %v120
    %122 = vmatmul.f32.gmra.mxu0 %v59
    %v123 = vpop.f32.mrf.mxu0
    %v124 = vadd.f32 %v37, %v123
    %125 = vmatmul.f32.gmra.mxu0 %v62
    %v126 = vpop.f32.mrf.mxu0
    %v127 = vadd.f32 %v37, %v126
    %128 = vmatmul.f32.gmra.mxu0 %v65
    %v129 = vpop.f32.mrf.mxu0
    %v130 = vadd.f32 %v37, %v129
    %131 = vmatmul.f32.gmra.mxu0 %v68
    %v132 = vpop.f32.mrf.mxu0
    %v133 = vadd.f32 %v37, %v132
    %134 = vmatmul.f32.gmra.mxu0 %v71
    %v135 = vpop.f32.mrf.mxu0
    %v136 = vadd.f32 %v37, %v135
    %137 = vmatmul.f32.gmra.mxu0 %v74
    %v138 = vpop.f32.mrf.mxu0
    %v139 = vadd.f32 %v37, %v138
    %140 = vmatmul.f32.gmra.mxu0 %v77
    %v141 = vpop.f32.mrf.mxu0
    %v142 = vadd.f32 %v37, %v141
    %143 = vmatmul.f32.gmra.mxu0 %v80
    %v144 = vpop.f32.mrf.mxu0
    %v145 = vadd.f32 %v37, %v144
    %146 = vmatmul.f32.gmra.mxu0 %v83
    %v147 = vpop.f32.mrf.mxu0
    %v148 = vadd.f32 %v37, %v147
    %149 = vmatmul.f32.gmra.mxu0 %v86
    %v150 = vpop.f32.mrf.mxu0
    %v151 = vadd.f32 %v37, %v150
    %152 = vdwg.mxu0
    %153 = vst [vmem:[#allocation2] sm:$0xff] %v106
    %154 = vst [vmem:[#allocation2 + $0x8] sm:$0xff] %v109
    %155 = vst [vmem:[#allocation2 + $0x10] sm:$0xff] %v112
    %156 = vst [vmem:[#allocation2 + $0x18] sm:$0xff] %v115
    %157 = vst [vmem:[#allocation2 + $0x20] sm:$0xff] %v118
    %158 = vst [vmem:[#allocation2 + $0x28] sm:$0xff] %v121
    %159 = vst [vmem:[#allocation2 + $0x30] sm:$0xff] %v124
    %160 = vst [vmem:[#allocation2 + $0x38] sm:$0xff] %v127
    %161 = vst [vmem:[#allocation2 + $0x40] sm:$0xff] %v130
    %162 = vst [vmem:[#allocation2 + $0x48] sm:$0xff] %v133
    %163 = vst [vmem:[#allocation2 + $0x50] sm:$0xff] %v136
    %164 = vst [vmem:[#allocation2 + $0x58] sm:$0xff] %v139
    %165 = vst [vmem:[#allocation2 + $0x60] sm:$0xff] %v142
    %166 = vst [vmem:[#allocation2 + $0x68] sm:$0xff] %v145
    %167 = vst [vmem:[#allocation2 + $0x70] sm:$0xff] %v148
    %168 = vst [vmem:[#allocation2 + $0x78] sm:$0xff] %v151
    // Predicated region
    $region14: #{tpu_custom_call.1} parent=1 // pred_check
      _
    $region15: #{tpu_custom_call.1} parent=1 // pred_check_branch
      %170 = sbr.rel (0) target = $region17
    $region16: #{tpu_custom_call.1} parent=1 // pred_region
      %172 = vsyncadd [#allocation3], 0
      %s173 = sshll.u32 [#allocation2], 4
      %s174 = int_to_ptr.vmem [resolvable:$true] %s173
      %s175 = sshll.u32 %s3, 4
      %s176 = int_to_ptr.hbm [resolvable:$true] %s175
      %181 = dma.vmem_to_hbm [thread:$0]  %s174, 2048, %s176, [#allocation3], 128, 128, 8
    $region17: #{tpu_custom_call.1} parent=1 // pred_fallthru
      _
    // Predicated region
    $region18: #{tpu_custom_call.1} parent=1 // pred_check
      _
    $region19: #{tpu_custom_call.1} parent=1 // pred_check_branch
      %183 = sbr.rel (0) target = $region21
    $region20: #{tpu_custom_call.1} parent=1 // pred_region
      %185 = dma.done [#allocation3], 2048
    $region21: #{tpu_custom_call.1} parent=1 // pred_fallthru
      _
    %186 = vsyncpa [#allocation3], 1

</llo_original>
